<compile_context>
chip_gen: v7x
topology: tpu7x:2x2x1
jax: 0.10.0
libtpu: 0.0.40
codegen_flags: <defaults>
</compile_context>

<pallas_src>
import functools

import jax
import jax.numpy as jnp
from jax.experimental import pallas as pl
from jax.experimental.pallas import tpu as pltpu


def _round_up(x, m):
    return (x + m - 1) // m * m


def _attn_gated_kernel(x_ref, wab_ref, bab_ref, wc_ref, bc_ref, a_out_ref, *,
                       d, small_c):
    # One fused gate projection: (TN, L) x (L, 2D) on the MXU, f32 accumulation.
    x = x_ref[...]
    ab = jnp.dot(x, wab_ref[...], preferred_element_type=jnp.float32) + bab_ref[...]

    a = jnp.tanh(ab[:, :d])            # f32 activations (v5e-safe elementwise path)
    b = jax.nn.sigmoid(ab[:, d:])
    gated = a * b                      # (TN, D) f32

    if small_c:
        # n_classes == 1: VPU multiply + lane (XLU) reduction instead of a
        # 1-lane-wide MXU pass.  wc_ref is the transposed weight row, (1, D).
        A = jnp.sum(gated * wc_ref[...], axis=-1, keepdims=True) + bc_ref[...]
    else:
        A = jnp.dot(gated, wc_ref[...],
                    preferred_element_type=jnp.float32) + bc_ref[...]

    a_out_ref[...] = A.astype(a_out_ref.dtype)


def attn_net_gated_forward(x, wa, ba, wb, bb, wc, bc, *, tn=None,
                           use_bf16_matmul=False):
    """Pallas forward for Attn_Net_Gated. Returns (A, x) like the PyTorch module.

    x  : (N, L)  float32
    wa : (L, D), ba: (1, D)     (pre-transposed nn.Linear weights)
    wb : (L, D), bb: (1, D)
    wc : (D, C), bc: (1, C)
    tn : optional row-tile size (defaults to 1024, clipped to the batch size)
    use_bf16_matmul : cast x and the fused gate weights to bf16 for the MXU
                      (f32 accumulation + f32 activations are kept).
    """
    N, L = x.shape
    D = wa.shape[1]
    C = wc.shape[1]

    # Fuse the two gate projections into a single (L, 2D) weight / (1, 2D) bias.
    wab = jnp.concatenate([wa, wb], axis=1)
    bab = jnp.concatenate([ba, bb], axis=1)

    x_in = x
    if use_bf16_matmul:
        x_in = x_in.astype(jnp.bfloat16)
        wab = wab.astype(jnp.bfloat16)

    # Row tiling: biggest tile that keeps double-buffering within VMEM; pad N so
    # every grid step sees a full tile (padded rows are sliced off afterwards).
    if tn is None:
        tn = 1024
    n_pad8 = _round_up(max(N, 1), 8)
    tn = max(8, min(_round_up(tn, 8), n_pad8))
    n_pad = _round_up(N, tn)
    if n_pad != N:
        x_in = jnp.pad(x_in, ((0, n_pad - N), (0, 0)))

    small_c = (C == 1)
    wc_k = wc.T if small_c else wc                      # (1, D) row for the VPU path
    wc_block = (C, D) if small_c else (D, C)

    kernel = functools.partial(_attn_gated_kernel, d=D, small_c=small_c)

    grid = (n_pad // tn,)
    x_itemsize = x_in.dtype.itemsize

    # VMEM budget: double-buffered x / output tiles + resident fused weights.
    vmem_bytes = (2 * tn * L * x_itemsize
                  + 2 * tn * C * 4
                  + wab.size * wab.dtype.itemsize
                  + (bab.size + wc.size + bc.size) * 4)
    vmem_limit = int(min(100 << 20, max(16 << 20, 2 * vmem_bytes + (4 << 20))))

    cost = pl.CostEstimate(
        flops=int(2 * n_pad * L * (2 * D) + 2 * n_pad * D * C + 3 * n_pad * D),
        transcendentals=int(2 * n_pad * D),
        bytes_accessed=int(x_in.size * x_itemsize
                           + wab.size * wab.dtype.itemsize
                           + bab.size * bab.dtype.itemsize
                           + wc.size * 4 + bc.size * 4
                           + n_pad * C * 4),
    )

    A_pad = pl.pallas_call(
        kernel,
        out_shape=jax.ShapeDtypeStruct((n_pad, C), jnp.float32),
        grid=grid,
        in_specs=[
            pl.BlockSpec((tn, L), lambda i: (i, 0)),        # x: tiled over rows
            pl.BlockSpec((L, 2 * D), lambda i: (0, 0)),     # fused gate weights (resident)
            pl.BlockSpec((1, 2 * D), lambda i: (0, 0)),     # fused gate bias
            pl.BlockSpec(wc_block, lambda i: (0, 0)),       # classifier weight
            pl.BlockSpec((1, C), lambda i: (0, 0)),         # classifier bias
        ],
        out_specs=pl.BlockSpec((tn, C), lambda i: (i, 0)),
        compiler_params=pltpu.CompilerParams(
            dimension_semantics=("parallel",),
            vmem_limit_bytes=vmem_limit,
        ),
        cost_estimate=cost,
    )(x_in, wab, bab, wc_k, bc)

    A = A_pad[:N] if n_pad != N else A_pad
    return A, x


def init_params(key, L, D, n_classes):
    """Deterministic init matching nn.Linear shapes (stored pre-transposed)."""
    k1, k2, k3, k4, k5, k6 = jax.random.split(key, 6)
    bound_a = 1.0 / (L ** 0.5)
    bound_c = 1.0 / (D ** 0.5)
    wa = jax.random.uniform(k1, (L, D), jnp.float32, -bound_a, bound_a)
    ba = jax.random.uniform(k2, (1, D), jnp.float32, -bound_a, bound_a)
    wb = jax.random.uniform(k3, (L, D), jnp.float32, -bound_a, bound_a)
    bb = jax.random.uniform(k4, (1, D), jnp.float32, -bound_a, bound_a)
    wc = jax.random.uniform(k5, (D, n_classes), jnp.float32, -bound_c, bound_c)
    bc = jax.random.uniform(k6, (1, n_classes), jnp.float32, -bound_c, bound_c)
    return wa, ba, wb, bb, wc, bc


if __name__ == "__main__":
    # Small shapes consistent with the module's forward: x is (N, L).
    # N deliberately NOT a multiple of the tile to exercise padding + multi-step grid.
    N, L, D, n_classes = 20, 128, 64, 1

    key = jax.random.PRNGKey(0)
    kx, kp = jax.random.split(key)
    x = jax.random.normal(kx, (N, L), jnp.float32)
    wa, ba, wb, bb, wc, bc = init_params(kp, L, D, n_classes)

    # Reference in plain JAX (same math as the PyTorch module).
    a_ref = jnp.tanh(x @ wa + ba)
    b_ref = jax.nn.sigmoid(x @ wb + bb)
    A_ref = (a_ref * b_ref) @ wc + bc

    # f32 path with a small forced tile -> 3 pipelined grid steps + padded last tile.
    A, x_out = attn_net_gated_forward(x, wa, ba, wb, bb, wc, bc, tn=8)
    jax.block_until_ready((A, x_out))
    assert A.shape == (N, n_classes)
    assert x_out.shape == (N, L)
    assert jnp.allclose(A, A_ref, atol=1e-5, rtol=1e-5)
    assert jnp.array_equal(x_out, x)

    # bf16 MXU-operand path (f32 accumulation + f32 activations), default tile size.
    A_bf16, _ = attn_net_gated_forward(x, wa, ba, wb, bb, wc, bc,
                                       use_bf16_matmul=True)
    jax.block_until_ready(A_bf16)
    assert jnp.allclose(A_bf16, A_ref, atol=1e-1, rtol=1e-1)

    # TODO(synk): nn.Dropout(0.25) branch (dropout=True) not implemented; the module's
    # default (dropout=False) inference forward is what this kernel covers.
    print("KERNEL_OK")
</pallas_src>

<mosaic_0001>
module attributes {stable_mosaic.version = 11 : i64} {
  func.func @_attn_gated_kernel(%arg0: i32, %arg1: memref<8x128xf32, #tpu.memory_space<vmem>>, %arg2: memref<128x128xf32, #tpu.memory_space<vmem>>, %arg3: memref<1x128xf32, #tpu.memory_space<vmem>>, %arg4: memref<1x64xf32, #tpu.memory_space<vmem>>, %arg5: memref<1x1xf32, #tpu.memory_space<vmem>>, %arg6: memref<8x1xf32, #tpu.memory_space<vmem>>) attributes {dimension_semantics = [#tpu.dimension_semantics<parallel>], iteration_bounds = array<i64: 3>, scalar_prefetch = 0 : i64, scratch_operands = 0 : i64, tpu.core_type = #tpu.core_type<tc>, window_params = [{transform_indices = @transform_0, window_bounds = array<i64: 8, 128>}, {pipeline_mode = #tpu.pipeline_mode<synchronous>, transform_indices = @transform_1, window_bounds = array<i64: 128, 128>}, {pipeline_mode = #tpu.pipeline_mode<synchronous>, transform_indices = @transform_2, window_bounds = array<i64: 1, 128>}, {pipeline_mode = #tpu.pipeline_mode<synchronous>, transform_indices = @transform_3, window_bounds = array<i64: 1, 64>}, {pipeline_mode = #tpu.pipeline_mode<synchronous>, transform_indices = @transform_4, window_bounds = array<i64: 1, 1>}, {transform_indices = @transform_5, window_bounds = array<i64: 8, 1>}]} {
    %c0 = arith.constant 0 : index
    %c0_0 = arith.constant 0 : index
    %0 = vector.load %arg1[%c0, %c0_0] : memref<8x128xf32, #tpu.memory_space<vmem>>, vector<8x128xf32>
    %c0_1 = arith.constant 0 : index
    %c0_2 = arith.constant 0 : index
    %1 = vector.load %arg2[%c0_1, %c0_2] : memref<128x128xf32, #tpu.memory_space<vmem>>, vector<128x128xf32>
    %cst = arith.constant dense<0.000000e+00> : vector<8x128xf32>
    %2 = tpu.matmul %0, %1, %cst {dimension_numbers = #tpu.dot_dimension_numbers<[1], [0], [0], [1], [0, 0, 1, 1], [], []>} : vector<8x128xf32>, vector<128x128xf32>, vector<8x128xf32> -> vector<8x128xf32>
    %c0_3 = arith.constant 0 : index
    %c0_4 = arith.constant 0 : index
    %3 = vector.load %arg3[%c0_3, %c0_4] : memref<1x128xf32, #tpu.memory_space<vmem>>, vector<1x128xf32>
    %4 = vector.broadcast %3 : vector<1x128xf32> to vector<8x128xf32>
    %5 = arith.addf %2, %4 : vector<8x128xf32>
    %6 = vector.extract_strided_slice %5 {offsets = [0, 0], sizes = [8, 64], strides = [1, 1]} : vector<8x128xf32> to vector<8x64xf32>
    %7 = math.tanh %6 : vector<8x64xf32>
    %8 = vector.extract_strided_slice %5 {offsets = [0, 64], sizes = [8, 64], strides = [1, 1]} : vector<8x128xf32> to vector<8x64xf32>
    %9 = arith.negf %8 : vector<8x64xf32>
    %10 = math.exp %9 : vector<8x64xf32>
    %cst_5 = arith.constant 1.000000e+00 : f32
    %11 = vector.broadcast %cst_5 : f32 to vector<8x64xf32>
    %12 = arith.addf %11, %10 : vector<8x64xf32>
    %13 = arith.divf %11, %12 : vector<8x64xf32>
    %14 = arith.mulf %7, %13 : vector<8x64xf32>
    %c0_6 = arith.constant 0 : index
    %c0_7 = arith.constant 0 : index
    %15 = vector.load %arg4[%c0_6, %c0_7] : memref<1x64xf32, #tpu.memory_space<vmem>>, vector<1x64xf32>
    %16 = vector.broadcast %15 : vector<1x64xf32> to vector<8x64xf32>
    %17 = arith.mulf %14, %16 : vector<8x64xf32>
    %cst_8 = arith.constant dense<0.000000e+00> : vector<8xf32>
    %18 = vector.multi_reduction <add>, %17, %cst_8 [1] : vector<8x64xf32> to vector<8xf32>
    %19 = vector.shape_cast %18 : vector<8xf32> to vector<8x1xf32>
    %c0_9 = arith.constant 0 : index
    %c0_10 = arith.constant 0 : index
    %20 = vector.load %arg5[%c0_9, %c0_10] : memref<1x1xf32, #tpu.memory_space<vmem>>, vector<1x1xf32>
    %21 = vector.broadcast %20 : vector<1x1xf32> to vector<8x1xf32>
    %22 = arith.addf %19, %21 : vector<8x1xf32>
    %c0_11 = arith.constant 0 : index
    %c0_12 = arith.constant 0 : index
    %23 = vector.load %arg6[%c0_11, %c0_12] : memref<8x1xf32, #tpu.memory_space<vmem>>, vector<8x1xf32>
    tpu.vector_store %arg6[%c0_11, %c0_12], %22 {strides = array<i32>} : memref<8x1xf32, #tpu.memory_space<vmem>>, vector<8x1xf32>,
    return
  }
  func.func @transform_0(%arg0: i32) -> (i32, i32) {
    %c0_i32 = arith.constant 0 : i32
    %c0_i32_0 = arith.constant 0 : i32
    return %arg0, %c0_i32 : i32, i32
  }
  func.func @transform_1(%arg0: i32) -> (i32, i32) {
    %c0_i32 = arith.constant 0 : i32
    %c0_i32_0 = arith.constant 0 : i32
    %c0_i32_1 = arith.constant 0 : i32
    return %c0_i32, %c0_i32_0 : i32, i32
  }
  func.func @transform_2(%arg0: i32) -> (i32, i32) {
    %c0_i32 = arith.constant 0 : i32
    %c0_i32_0 = arith.constant 0 : i32
    %c0_i32_1 = arith.constant 0 : i32
    return %c0_i32, %c0_i32_0 : i32, i32
  }
  func.func @transform_3(%arg0: i32) -> (i32, i32) {
    %c0_i32 = arith.constant 0 : i32
    %c0_i32_0 = arith.constant 0 : i32
    %c0_i32_1 = arith.constant 0 : i32
    return %c0_i32, %c0_i32_0 : i32, i32
  }
  func.func @transform_4(%arg0: i32) -> (i32, i32) {
    %c0_i32 = arith.constant 0 : i32
    %c0_i32_0 = arith.constant 0 : i32
    %c0_i32_1 = arith.constant 0 : i32
    return %c0_i32, %c0_i32_0 : i32, i32
  }
  func.func @transform_5(%arg0: i32) -> (i32, i32) {
    %c0_i32 = arith.constant 0 : i32
    %c0_i32_0 = arith.constant 0 : i32
    return %arg0, %c0_i32 : i32, i32
  }
}

</mosaic_0001>

<llo_original>
// kernel: tpu_custom_call.1
$region0: #{tpu_custom_call.1}
  #allocation0 [shape = 'u32[]', space=smem, size = 0x4, offset = 0x4, fixed_abs, tag = 'smem constant byte address 0x4 - core index']
  #allocation1 [shape = 'u32[144,128]{1,0:T(1,128)}', space=vmem, size = 0x12000, scoped, tag = 'internal scratch']
  #allocation2 [shape = 'f32[1,1]{1,0:T(1,128)S(1)}', space=vmem, size = 0x200, scoped, tag = 'scoped memory for tpu_custom_call.1']
  %s0 = inlined_call_operand.hbm [shape: f32[24,128], index: 0, kind: input, shape index: {}]
  %s1 = inlined_call_operand.hbm [shape: f32[128,128], index: 1, kind: input, shape index: {}]
  %s2 = inlined_call_operand.vmem [shape: f32[1,128], index: 2, kind: input, shape index: {}]
  %s3 = inlined_call_operand.vmem [shape: f32[1,64], index: 3, kind: input, shape index: {}]
  %s4 = inlined_call_operand.<no memory space> [shape: f32[1,1], index: 4, kind: input, shape index: {}]
  %s5 = inlined_call_operand.vmem [shape: f32[24,1], index: 5, kind: output, shape index: {}]
  %s6 = sld [smem:[#allocation0]]
  $region61: #{tpu_custom_call.1} parent=0
    _
  %s8 = ssub.s32 1, %s6
  %s9 = scalar_select 0, %s8, %s6
  %v10 = vstv %s4
  %11 = vst [vmem:[#allocation2] sm:$0x1] %v10
  $region1: #{tpu_custom_call.1} parent=0
    #allocation3 [shape = 'u8[8192]{0}', space=vmem, size = 0x2000, scoped, tag = 'input window, operand 0']
    #allocation4 [shape = 's32[2]{0}', space=sflag, size = 0x8, scoped, tag = 'scoped memory for tpu_custom_call.1']
    #allocation5 [shape = 'u8[65536]{0}', space=vmem, size = 0x10000, scoped, tag = 'input window, operand 1, single buffered']
    #allocation6 [shape = 's32[1]{0}', space=sflag, size = 0x4, scoped, tag = 'scoped memory for tpu_custom_call.1']
    %12 = vsyncpa [#allocation4], 0
    %s13 = scalar_lea.sflag [#allocation4], 1
    %14 = vsyncpa %s13, 0
    %15 = vsyncpa [#allocation6], 0
    loop: start=0, step=1, limit=5
    $region2: #{tpu_custom_call.1} parent=1 // loop_pre_header
      _
    $region3: #{tpu_custom_call.1} parent=1 // loop_header
      %s17 = sphi 0, %s21
      %p18 = scmp.ge.s32.totalorder %s17, 5
      %s27 = sphi 0, %s29
      %s30 = sphi 0, %s27
      %s31 = sphi 0, %s30
      %s47 = sphi 0, %s31
      %s51 = sphi 0, %s51
      %s53 = sphi 0, %s51
      %s54 = sphi 0, %s53
      %s68 = sphi 0, %s54
      %s72 = sphi 0, %s72
      %s74 = sphi 0, %s72
      %s75 = sphi 0, %s74
      %s89 = sphi 0, %s75
      %s93 = sphi 0, %s93
      %s95 = sphi 0, %s93
      %s96 = sphi 0, %s95
      %s110 = sphi 0, %s96
      %s114 = sphi 0, %s114
      %s116 = sphi 0, %s114
      %s117 = sphi 0, %s116
      %s131 = sphi 0, %s117
      %s137 = sphi 0, %s139
      %s140 = sphi 0, %s137
      %s141 = sphi 0, %s140
      %s157 = sphi 0, %s141
    $region4: #{tpu_custom_call.1} parent=1 // loop_header_branch
      %20 = sbr.rel (%p18) target = $region8
    $region5: #{tpu_custom_call.1} parent=1 // loop_body
      %s22 = ssub.s32 %s17, 1
      %s23 = ssub.s32 %s17, 2
      %s24 = sadd.s32 %s17, 1
      %s25 = ssub.s32 %s17, %s24
      %p26 = scmp.eq.s32.totalorder %s25, 0
      %s28 = sadd.s32 %s27, 1
      %s29 = scalar_select %p26, %s27, %s28
      %p32 = pneg %p26
      %p33 = scmp.eq.s32.totalorder %s17, 2
      %p34 = por %p32, %p33
      %p35 = scmp.ne.s32.totalorder %s27, %s30
      %p36 = scmp.eq.s32.totalorder %s17, 0
      %p37 = por %p35, %p36
      %p38 = scmp.ne.s32.totalorder %s27, %s30
      %p39 = scmp.eq.s32.totalorder %s22, 2
      %p40 = por %p38, %p39
      %p41 = scmp.ne.s32.totalorder %s30, %s31
      %p42 = scmp.eq.s32.totalorder %s22, 0
      %p43 = por %p41, %p42
      %p44 = scmp.ne.s32.totalorder %s30, %s31
      %p45 = scmp.eq.s32.totalorder %s23, 2
      %p46 = por %p44, %p45
      %p48 = scmp.ne.s32.totalorder %s31, %s47
      %p49 = scmp.eq.s32.totalorder %s23, 0
      %p50 = por %p48, %p49
      %s52 = sadd.s32 %s51, 1
      %p55 = scmp.eq.s32.totalorder %s17, 2
      %p56 = scmp.ne.s32.totalorder %s51, %s53
      %p57 = scmp.eq.s32.totalorder %s17, 0
      %p58 = por %p56, %p57
      %p59 = scmp.ne.s32.totalorder %s51, %s53
      %p60 = scmp.eq.s32.totalorder %s22, 2
      %p61 = por %p59, %p60
      %p62 = scmp.ne.s32.totalorder %s53, %s54
      %p63 = scmp.eq.s32.totalorder %s22, 0
      %p64 = por %p62, %p63
      %p65 = scmp.ne.s32.totalorder %s53, %s54
      %p66 = scmp.eq.s32.totalorder %s23, 2
      %p67 = por %p65, %p66
      %p69 = scmp.ne.s32.totalorder %s54, %s68
      %p70 = scmp.eq.s32.totalorder %s23, 0
      %p71 = por %p69, %p70
      %s73 = sadd.s32 %s72, 1
      %p76 = scmp.eq.s32.totalorder %s17, 2
      %p77 = scmp.ne.s32.totalorder %s72, %s74
      %p78 = scmp.eq.s32.totalorder %s17, 0
      %p79 = por %p77, %p78
      %p80 = scmp.ne.s32.totalorder %s72, %s74
      %p81 = scmp.eq.s32.totalorder %s22, 2
      %p82 = por %p80, %p81
      %p83 = scmp.ne.s32.totalorder %s74, %s75
      %p84 = scmp.eq.s32.totalorder %s22, 0
      %p85 = por %p83, %p84
      %p86 = scmp.ne.s32.totalorder %s74, %s75
      %p87 = scmp.eq.s32.totalorder %s23, 2
      %p88 = por %p86, %p87
      %p90 = scmp.ne.s32.totalorder %s75, %s89
      %p91 = scmp.eq.s32.totalorder %s23, 0
      %p92 = por %p90, %p91
      %s94 = sadd.s32 %s93, 1
      %p97 = scmp.eq.s32.totalorder %s17, 2
      %p98 = scmp.ne.s32.totalorder %s93, %s95
      %p99 = scmp.eq.s32.totalorder %s17, 0
      %p100 = por %p98, %p99
      %p101 = scmp.ne.s32.totalorder %s93, %s95
      %p102 = scmp.eq.s32.totalorder %s22, 2
      %p103 = por %p101, %p102
      %p104 = scmp.ne.s32.totalorder %s95, %s96
      %p105 = scmp.eq.s32.totalorder %s22, 0
      %p106 = por %p104, %p105
      %p107 = scmp.ne.s32.totalorder %s95, %s96
      %p108 = scmp.eq.s32.totalorder %s23, 2
      %p109 = por %p107, %p108
      %p111 = scmp.ne.s32.totalorder %s96, %s110
      %p112 = scmp.eq.s32.totalorder %s23, 0
      %p113 = por %p111, %p112
      %s115 = sadd.s32 %s114, 1
      %p118 = scmp.eq.s32.totalorder %s17, 2
      %p119 = scmp.ne.s32.totalorder %s114, %s116
      %p120 = scmp.eq.s32.totalorder %s17, 0
      %p121 = por %p119, %p120
      %p122 = scmp.ne.s32.totalorder %s114, %s116
      %p123 = scmp.eq.s32.totalorder %s22, 2
      %p124 = por %p122, %p123
      %p125 = scmp.ne.s32.totalorder %s116, %s117
      %p126 = scmp.eq.s32.totalorder %s22, 0
      %p127 = por %p125, %p126
      %p128 = scmp.ne.s32.totalorder %s116, %s117
      %p129 = scmp.eq.s32.totalorder %s23, 2
      %p130 = por %p128, %p129
      %p132 = scmp.ne.s32.totalorder %s117, %s131
      %p133 = scmp.eq.s32.totalorder %s23, 0
      %p134 = por %p132, %p133
      %s135 = ssub.s32 %s17, %s24
      %p136 = scmp.eq.s32.totalorder %s135, 0
      %s138 = sadd.s32 %s137, 1
      %s139 = scalar_select %p136, %s137, %s138
      %p142 = pneg %p136
      %p143 = scmp.eq.s32.totalorder %s17, 2
      %p144 = por %p142, %p143
      %p145 = scmp.ne.s32.totalorder %s137, %s140
      %p146 = scmp.eq.s32.totalorder %s17, 0
      %p147 = por %p145, %p146
      %p148 = scmp.ne.s32.totalorder %s137, %s140
      %p149 = scmp.eq.s32.totalorder %s22, 2
      %p150 = por %p148, %p149
      %p151 = scmp.ne.s32.totalorder %s140, %s141
      %p152 = scmp.eq.s32.totalorder %s22, 0
      %p153 = por %p151, %p152
      %p154 = scmp.ne.s32.totalorder %s140, %s141
      %p155 = scmp.eq.s32.totalorder %s23, 2
      %p156 = por %p154, %p155
      %p158 = scmp.ne.s32.totalorder %s141, %s157
      %p159 = scmp.eq.s32.totalorder %s23, 0
      %p160 = por %p158, %p159
      %p161 = scmp.le.s32.totalorder 1, %s17
      %p162 = scmp.lt.s32.totalorder %s17, 4
      %p163 = pnand %p161, %p162
      %p164 = pneg %p163
      // Predicated region
      $region9: #{tpu_custom_call.1} parent=5 // pred_check
        _
      $region10: #{tpu_custom_call.1} parent=5 // pred_check_branch
        %166 = sbr.rel (%p163) target = $region12
      $region11: #{tpu_custom_call.1} parent=5 // pred_region
        %s167 = ssub.s32 %s17, 1
        // Predicated region
        $region13: #{tpu_custom_call.1} parent=11 // pred_check
          %p168 = pneg %p64
        $region14: #{tpu_custom_call.1} parent=11 // pred_check_branch
          %170 = sbr.rel (%p168) target = $region16
        $region15: #{tpu_custom_call.1} parent=11 // pred_region
          %s172 = ssub.s32 2048, 2048
          %173 = vsyncadd [#allocation6], %s172
          %s174 = sshll.u32 [#allocation5], 4
          %s175 = int_to_ptr.vmem [resolvable:$true] %s174
          %180 = dma.hbm_to_vmem [thread:$0]  %s1, 2048, %s175, [#allocation6], 128, 128, 8
        $region16: #{tpu_custom_call.1} parent=11 // pred_fallthru
          _
        // Predicated region
        $region17: #{tpu_custom_call.1} parent=11 // pred_check
          %p181 = pneg %p85
        $region18: #{tpu_custom_call.1} parent=11 // pred_check_branch
          %183 = sbr.rel (%p181) target = $region20
        $region19: #{tpu_custom_call.1} parent=11 // pred_region
          _
        $region20: #{tpu_custom_call.1} parent=11 // pred_fallthru
          _
        // Predicated region
        $region21: #{tpu_custom_call.1} parent=11 // pred_check
          %p184 = pneg %p106
        $region22: #{tpu_custom_call.1} parent=11 // pred_check_branch
          %186 = sbr.rel (%p184) target = $region24
        $region23: #{tpu_custom_call.1} parent=11 // pred_region
          _
        $region24: #{tpu_custom_call.1} parent=11 // pred_fallthru
          _
        // Predicated region
        $region25: #{tpu_custom_call.1} parent=11 // pred_check
          %p187 = pneg %p127
        $region26: #{tpu_custom_call.1} parent=11 // pred_check_branch
          %189 = sbr.rel (%p187) target = $region28
        $region27: #{tpu_custom_call.1} parent=11 // pred_region
          _
        $region28: #{tpu_custom_call.1} parent=11 // pred_fallthru
          _
      $region12: #{tpu_custom_call.1} parent=5 // pred_fallthru
        _
      %p190 = scmp.lt.s32.totalorder %s17, 3
      // Predicated region
      $region29: #{tpu_custom_call.1} parent=5 // pred_check
        %p191 = pneg %p190
      $region30: #{tpu_custom_call.1} parent=5 // pred_check_branch
        %193 = sbr.rel (%p191) target = $region32
      $region31: #{tpu_custom_call.1} parent=5 // pred_region
        // Predicated region
        $region33: #{tpu_custom_call.1} parent=31 // pred_check
          %p194 = pneg %p37
        $region34: #{tpu_custom_call.1} parent=31 // pred_check_branch
          %196 = sbr.rel (%p194) target = $region36
        $region35: #{tpu_custom_call.1} parent=31 // pred_region
          %s197 = sand.u32 %s27, 1
          %s198 = scalar_lea.sflag [#allocation4], %s197
          %s199 = sand.u32 %s27, 1
          %s200 = smul.addr %s199, 8
          %s201 = scalar_lea.vmem [#allocation3], %s200
          %s203 = ssub.s32 128, 128
          %204 = vsyncadd %s198, %s203
          %s205 = smul.addr %s17, 128
          %s206 = scalar_lea.hbm %s0, %s205
          %s208 = sshll.u32 %s201, 4
          %s209 = int_to_ptr.vmem [resolvable:$true] %s208
          %211 = dma.hbm_to_vmem [thread:$0]  %s206, 128, %s209, %s198
        $region36: #{tpu_custom_call.1} parent=31 // pred_fallthru
          _
      $region32: #{tpu_custom_call.1} parent=5 // pred_fallthru
        _
      %p212 = scmp.le.s32.totalorder 1, %s17
      %p213 = scmp.lt.s32.totalorder %s17, 4
      %p214 = pnand %p212, %p213
      %p215 = pneg %p214
      // Predicated region
      $region37: #{tpu_custom_call.1} parent=5 // pred_check
        _
      $region38: #{tpu_custom_call.1} parent=5 // pred_check_branch
        %217 = sbr.rel (%p214) target = $region40
      $region39: #{tpu_custom_call.1} parent=5 // pred_region
        %s218 = ssub.s32 %s17, 1
        %s219 = sand.u32 %s30, 1
        %s220 = scalar_lea.sflag [#allocation4], %s219
        %s221 = sand.u32 %s30, 1
        %s222 = smul.addr %s221, 8
        %s223 = scalar_lea.vmem [#allocation3], %s222
        // Predicated region
        $region41: #{tpu_custom_call.1} parent=39 // pred_check
          %p224 = pneg %p43
        $region42: #{tpu_custom_call.1} parent=39 // pred_check_branch
          %226 = sbr.rel (%p224) target = $region44
        $region43: #{tpu_custom_call.1} parent=39 // pred_region
          %227 = dma.done %s220, 128
        $region44: #{tpu_custom_call.1} parent=39 // pred_fallthru
          _
        // Predicated region
        $region45: #{tpu_custom_call.1} parent=39 // pred_check
          %p228 = pneg %p64
        $region46: #{tpu_custom_call.1} parent=39 // pred_check_branch
          %230 = sbr.rel (%p228) target = $region48
        $region47: #{tpu_custom_call.1} parent=39 // pred_region
          %231 = dma.done [#allocation6], 2048
        $region48: #{tpu_custom_call.1} parent=39 // pred_fallthru
          _
        %s232 = sand.u32 %s30, 1
        %s233 = scalar_lea.sflag [#allocation4], %s232
        %s234 = sand.u32 %s30, 1
        %s235 = smul.addr %s234, 8
        %s236 = scalar_lea.vmem [#allocation3], %s235
        %p237 = pneg %p43
        %p238 = pneg %p40
        %p239 = pneg %p64
        %p240 = pneg %p61
        %p241 = pneg %p85
        %p242 = pneg %p82
        %p243 = pneg %p106
        %p244 = pneg %p103
        %p245 = pneg %p127
        %p246 = pneg %p124
        %p247 = pneg %p153
        %p248 = pneg %p150
        %p249 = scmp.lt.s32.totalorder %s22, 2
        %s250 = scalar_select %p249, %s22, 2
        %s251 = smul.addr %s250, 8
        %s252 = scalar_lea.vmem %s5, %s251
        %p253 = scmp.lt.s32.totalorder %s22, 2
        %s254 = scalar_select %p253, %s22, 2
        %s255 = smul.addr %s254, 8
        %s256 = scalar_lea.vmem %s5, %s255
        %v257 = vld [vmem:[%s223] sm:$0xff]
        %v258 = vld [vmem:[#allocation5] sm:$0xff]
        %v259 = vld [vmem:[#allocation5 + $0x8] sm:$0xff]
        %v260 = vld [vmem:[#allocation5 + $0x10] sm:$0xff]
        %v261 = vld [vmem:[#allocation5 + $0x18] sm:$0xff]
        %v262 = vld [vmem:[#allocation5 + $0x20] sm:$0xff]
        %v263 = vld [vmem:[#allocation5 + $0x28] sm:$0xff]
        %v264 = vld [vmem:[#allocation5 + $0x30] sm:$0xff]
        %v265 = vld [vmem:[#allocation5 + $0x38] sm:$0xff]
        %v266 = vld [vmem:[#allocation5 + $0x40] sm:$0xff]
        %v267 = vld [vmem:[#allocation5 + $0x48] sm:$0xff]
        %v268 = vld [vmem:[#allocation5 + $0x50] sm:$0xff]
        %v269 = vld [vmem:[#allocation5 + $0x58] sm:$0xff]
        %v270 = vld [vmem:[#allocation5 + $0x60] sm:$0xff]
        %v271 = vld [vmem:[#allocation5 + $0x68] sm:$0xff]
        %v272 = vld [vmem:[#allocation5 + $0x70] sm:$0xff]
        %v273 = vld [vmem:[#allocation5 + $0x78] sm:$0xff]
        %v274 = vld [vmem:[%s2] sm:$0x1]
        %v276 = vlaneseq
        %v277 = vshrl.u32 %v276, 7
        %v278 = vsub.s32 0, %v277
        %v279 = vrot.slane %v274, %v278
        %281 = vmatprep.subr.mxu0 0.0
        %282 = vmatpush1.msra.mxu0 %v258
        %283 = vmatprep.subr.mxu0 0.0
        %284 = vmatpush1.msra.mxu0 %v259
        %285 = vmatprep.subr.mxu0 0.0
        %286 = vmatpush1.msra.mxu0 %v260
        %287 = vmatprep.subr.mxu0 0.0
        %288 = vmatpush1.msra.mxu0 %v261
        %289 = vmatprep.subr.mxu0 0.0
        %290 = vmatpush1.msra.mxu0 %v262
        %291 = vmatprep.subr.mxu0 0.0
        %292 = vmatpush1.msra.mxu0 %v263
        %293 = vmatprep.subr.mxu0 0.0
        %294 = vmatpush1.msra.mxu0 %v264
        %295 = vmatprep.subr.mxu0 0.0
        %296 = vmatpush1.msra.mxu0 %v265
        %297 = vmatprep.subr.mxu0 0.0
        %298 = vmatpush1.msra.mxu0 %v266
        %299 = vmatprep.subr.mxu0 0.0
        %300 = vmatpush1.msra.mxu0 %v267
        %301 = vmatprep.subr.mxu0 0.0
        %302 = vmatpush1.msra.mxu0 %v268
        %303 = vmatprep.subr.mxu0 0.0
        %304 = vmatpush1.msra.mxu0 %v269
        %305 = vmatprep.subr.mxu0 0.0
        %306 = vmatpush1.msra.mxu0 %v270
        %307 = vmatprep.subr.mxu0 0.0
        %308 = vmatpush1.msra.mxu0 %v271
        %309 = vmatprep.subr.mxu0 0.0
        %310 = vmatpush1.msra.mxu0 %v272
        %311 = vmatprep.subr.mxu0 0.0
        %312 = vmatpush1.msra.mxu0 %v273
        %313 = vmatprep.subr.mxu0 0.0
        %314 = vmatpush1.msra.mxu0 0.0
        %315 = vmatprep.subr.mxu0 0.0
        %316 = vmatpush1.msra.mxu0 0.0
        %317 = vmatprep.subr.mxu0 0.0
        %318 = vmatpush1.msra.mxu0 0.0
        %319 = vmatprep.subr.mxu0 0.0
        %320 = vmatpush1.msra.mxu0 0.0
        %321 = vmatprep.subr.mxu0 0.0
        %322 = vmatpush1.msra.mxu0 0.0
        %323 = vmatprep.subr.mxu0 0.0
        %324 = vmatpush1.msra.mxu0 0.0
        %325 = vmatprep.subr.mxu0 0.0
        %326 = vmatpush1.msra.mxu0 0.0
        %327 = vmatprep.subr.mxu0 0.0
        %328 = vmatpush1.msra.mxu0 0.0
        %329 = vmatprep.subr.mxu0 0.0
        %330 = vmatpush1.msra.mxu0 0.0
        %331 = vmatprep.subr.mxu0 0.0
        %332 = vmatpush1.msra.mxu0 0.0
        %333 = vmatprep.subr.mxu0 0.0
        %334 = vmatpush1.msra.mxu0 0.0
        %335 = vmatprep.subr.mxu0 0.0
        %336 = vmatpush1.msra.mxu0 0.0
        %337 = vmatprep.subr.mxu0 0.0
        %338 = vmatpush1.msra.mxu0 0.0
        %339 = vmatprep.subr.mxu0 0.0
        %340 = vmatpush1.msra.mxu0 0.0
        %341 = vmatprep.subr.mxu0 0.0
        %342 = vmatpush1.msra.mxu0 0.0
        %343 = vmatprep.subr.mxu0 0.0
        %344 = vmatpush1.msra.mxu0 0.0
        %345 = vmatprep.mubr.f32.mxu0 0.0
        %346 = vmatmul.mubr.f32.gmra.mrb[0].mxu0 %v257
        %v347 = vpop.f32.mrb[0].mxu0
        %v348 = vadd.f32 %v279, %v347
        %v349 = vpop.f32.mrb[0].mxu0
        %350 = vdwg.mxu0
        %v351 = vtanh.pop %v348
        %v352 = vxor.u32 %v348, 2147483648
        %v353 = vmul.f32 %v352, 1.442695
        %v354 = vpow.pop %v353
        %v355 = vadd.f32 %v354, 1.0
        %v356 = vrcp.pop %v355
        %v357 = vmul.f32 1.0, %v356
        %359 = vrot.lane.b32.xlu0 %v357, 64
        %v360 = vpop.permute.xlu0 %359
        %v362 = vmul.f32 %v351, %v360
        %v363 = vld [vmem:[%s3] sm:$0x1]
        %v365 = vlaneseq
        %v366 = vshrl.u32 %v365, 7
        %v367 = vsub.s32 0, %v366
        %v368 = vrot.slane %v363, %v367
        %v370 = vmul.f32 %v362, %v368
        %vm371 = vcmask 523264
        %v372 = vsel %vm371, %v370, 0.0
        %373 = vadd.xlane.f32.xlu0 %v372
        %v374 = vpop.xlane.xlu0 %373
        %v375 = vld [vmem:[#allocation2] sm:$0x1]
        %v377 = vlaneseq
        %v378 = vshrl.u32 %v377, 7
        %v379 = vsub.s32 0, %v378
        %v380 = vrot.slane %v375, %v379
        %v382 = vadd.f32 %v374, %v380
        %vm383 = vcmask 7168
        %384 = vst.msk [vmem:[%s256] sm:$0xff] %vm383, %v382
        %p385 = scmp.lt.s32.totalorder %s22, 2
        %s386 = scalar_select %p385, %s22, 2
        %s387 = smul.addr %s386, 8
        %s388 = scalar_lea.vmem %s5, %s387
        // Predicated region
        $region49: #{tpu_custom_call.1} parent=39 // pred_check
          %p389 = pneg %p150
        $region50: #{tpu_custom_call.1} parent=39 // pred_check_branch
          %391 = sbr.rel (%p389) target = $region52
        $region51: #{tpu_custom_call.1} parent=39 // pred_region
          _
        $region52: #{tpu_custom_call.1} parent=39 // pred_fallthru
          _
      $region40: #{tpu_custom_call.1} parent=5 // pred_fallthru
        _
      %p392 = scmp.le.s32.totalorder 2, %s17
      // Predicated region
      $region53: #{tpu_custom_call.1} parent=5 // pred_check
        %p393 = pneg %p392
      $region54: #{tpu_custom_call.1} parent=5 // pred_check_branch
        %395 = sbr.rel (%p393) target = $region56
      $region55: #{tpu_custom_call.1} parent=5 // pred_region
        %s396 = ssub.s32 %s17, 2
        // Predicated region
        $region57: #{tpu_custom_call.1} parent=55 // pred_check
          %p397 = pneg %p156
        $region58: #{tpu_custom_call.1} parent=55 // pred_check_branch
          %399 = sbr.rel (%p397) target = $region60
        $region59: #{tpu_custom_call.1} parent=55 // pred_region
          %p400 = scmp.lt.s32.totalorder %s23, 2
          %s401 = scalar_select %p400, %s23, 2
          %s402 = smul.addr %s401, 8
          %s403 = scalar_lea.vmem %s5, %s402
        $region60: #{tpu_custom_call.1} parent=55 // pred_fallthru
          _
      $region56: #{tpu_custom_call.1} parent=5 // pred_fallthru
        _
    $region6: #{tpu_custom_call.1} parent=1 // loop_footer
      %s21 = sadd.s32 1, %s17
    $region7: #{tpu_custom_call.1} parent=1 // loop_footer_branch
      %16 = sbr.rel target = $region3
    $region8: #{tpu_custom_call.1} parent=1 // loop_exit
      _
    %404 = vsyncpa [#allocation4], 1
    %s405 = scalar_lea.sflag [#allocation4], 1
    %406 = vsyncpa %s405, 1
    %407 = vsyncpa [#allocation6], 1

</llo_original>
